<compile_context>
chip_gen: v5e
topology: v5e:2x2
jax: 0.10.0
libtpu: 0.0.40
codegen_flags: <defaults>
</compile_context>

<pallas_src>
import math

import jax
import jax.numpy as jnp
from jax.experimental import pallas as pl
from jax.experimental.pallas import tpu as pltpu


def _round_up(x, m):
    return ((x + m - 1) // m) * m


# --------------------------------------------------------------------------
# Flat path: y = x2d @ W^T + b over M = B*S rows (no snapshot padding needed).
# --------------------------------------------------------------------------
def _linear_flat_kernel(x_ref, w_ref, b_ref, o_ref):
    # x_ref: (tm, K) f32 input tile  (bf16 cast done here, not in the wrapper)
    # w_ref: (K, N)  bf16 transposed weight, VMEM-resident across grid steps
    # b_ref: (1, N)  f32 bias row,   VMEM-resident across grid steps
    # o_ref: (tm, N) f32 output tile (N == out_dim == full array dim)
    acc = jnp.dot(x_ref[...].astype(jnp.bfloat16), w_ref[...],
                  preferred_element_type=jnp.float32)
    o_ref[...] = acc + b_ref[...]


def _pallas_linear_flat(x2d, w_t, bias2d, *, tm):
    """x2d (M, K) f32, w_t (K, N) bf16, bias2d (1, N) f32 -> (M, N) f32."""
    M, K = x2d.shape
    _, N = w_t.shape
    grid = (pl.cdiv(M, tm),)

    cost = pl.CostEstimate(
        flops=2 * M * K * N,
        transcendentals=0,
        bytes_accessed=M * K * 4 + K * N * 2 + N * 4 + M * N * 4,
    )

    return pl.pallas_call(
        _linear_flat_kernel,
        out_shape=jax.ShapeDtypeStruct((M, N), jnp.float32),
        grid_spec=pltpu.PrefetchScalarGridSpec(
            num_scalar_prefetch=0,
            grid=grid,
            in_specs=[
                # x tile over M; ragged final block is fine (row-independent).
                pl.BlockSpec((tm, K), lambda i: (i, 0)),
                # Full weight / bias stay resident in VMEM across grid steps.
                # TODO(synk): once K*N*2B (double-buffered) approaches ~half of
                # v7x's 64 MiB VMEM, add a K grid axis ("arbitrary") + f32 VMEM
                # accumulator, mark these specs pipeline_mode=pl.Buffered(1)
                # and set vmem_limit_bytes explicitly.
                pl.BlockSpec((K, N), lambda i: (0, 0)),
                pl.BlockSpec((1, N), lambda i: (0, 0)),
            ],
            out_specs=pl.BlockSpec((tm, N), lambda i: (i, 0)),
        ),
        compiler_params=pltpu.CompilerParams(
            dimension_semantics=("parallel",),
        ),
        cost_estimate=cost,
    )(x2d, w_t, bias2d)


# --------------------------------------------------------------------------
# Padded path: output is (B, number_of_snapshot, N); rows >= S get the bias
# (0 @ W^T + b == b), written directly in-kernel — no concat in HBM.
# --------------------------------------------------------------------------
def _make_padded_kernel(s_real, s_out):
    def kernel(x_ref, w_ref, b_ref, o_ref):
        # x_ref: (S, K) f32 — one batch element's real snapshot rows
        # o_ref: (S_out, N) f32 — padded snapshot rows filled with the bias
        y = jnp.dot(x_ref[...].astype(jnp.bfloat16), w_ref[...],
                    preferred_element_type=jnp.float32)
        o_ref[:s_real, :] = y + b_ref[...]
        o_ref[s_real:, :] = jnp.broadcast_to(
            b_ref[...], (s_out - s_real, b_ref.shape[1]))
    return kernel


def _pallas_linear_padded(x3d, w_t, bias2d, s_out):
    B, S, K = x3d.shape
    _, N = w_t.shape

    cost = pl.CostEstimate(
        flops=2 * B * S * K * N,
        transcendentals=0,
        bytes_accessed=B * S * K * 4 + K * N * 2 + N * 4 + B * s_out * N * 4,
    )

    return pl.pallas_call(
        _make_padded_kernel(S, s_out),
        out_shape=jax.ShapeDtypeStruct((B, s_out, N), jnp.float32),
        grid_spec=pltpu.PrefetchScalarGridSpec(
            num_scalar_prefetch=0,
            grid=(B,),
            in_specs=[
                pl.BlockSpec((None, S, K), lambda b: (b, 0, 0)),   # squeeze batch
                pl.BlockSpec((K, N), lambda b: (0, 0)),
                pl.BlockSpec((1, N), lambda b: (0, 0)),
            ],
            out_specs=pl.BlockSpec((None, s_out, N), lambda b: (b, 0, 0)),
        ),
        compiler_params=pltpu.CompilerParams(
            dimension_semantics=("parallel",),
        ),
        cost_estimate=cost,
    )(x3d, w_t, bias2d)


class LinearEmbeddingPallas:
    """JAX/Pallas port of the PyTorch LinearEmbedding module."""

    _MAX_TM = 512        # DMA-efficiency plateau (~85% of HBM roofline at 512)
    _MIN_SPLIT_M = 256   # above this, aim for >= 2 grid steps (v7x megacore)

    def __init__(self, in_dim, out_dim, number_of_snapshot, key):
        self.in_dim = in_dim
        self.out_dim = out_dim
        self.number_of_snapshot = number_of_snapshot

        # Deterministic init mimicking nn.Linear: U(-1/sqrt(in_dim), 1/sqrt(in_dim)).
        k_w, k_b = jax.random.split(key)
        bound = 1.0 / math.sqrt(in_dim)
        w = jax.random.uniform(k_w, (out_dim, in_dim), jnp.float32, -bound, bound)
        b = jax.random.uniform(k_b, (out_dim,), jnp.float32, -bound, bound)

        # Kernel layout: transposed bf16 weight (in_dim, out_dim), stored once
        # (no per-call cast), and an f32 bias row.
        self.w_t_bf16 = jnp.asarray(w.T, dtype=jnp.bfloat16)
        self.bias2d = jnp.asarray(b).reshape(1, out_dim)

    def _choose_tm(self, m):
        if m <= self._MIN_SPLIT_M:
            return m                  # single block; block dim == full dim is legal
        n_tiles = max(2, -(-m // self._MAX_TM))
        tm = _round_up(-(-m // n_tiles), 16)
        return min(tm, self._MAX_TM)

    def __call__(self, x, padding=False):
        # x: (B, S, in_dim) float32
        B, S, D = x.shape
        assert D == self.in_dim
        if padding:
            if S > self.number_of_snapshot:
                raise ValueError(
                    f"padding=True requires S ({S}) <= number_of_snapshot "
                    f"({self.number_of_snapshot})")
            if S < self.number_of_snapshot:
                # Pad rows produced in-kernel (bias row); no extra HBM pass.
                return _pallas_linear_padded(
                    x, self.w_t_bf16, self.bias2d, self.number_of_snapshot)
        # No padding needed: flatten (free reshape) and tile over rows.
        m = B * S
        y2d = _pallas_linear_flat(
            x.reshape(m, D), self.w_t_bf16, self.bias2d, tm=self._choose_tm(m))
        return y2d.reshape(B, S, self.out_dim)


if __name__ == "__main__":
    key = jax.random.PRNGKey(0)
    k_param, k_x = jax.random.split(key)

    batch = 2
    seq = 5                  # current number of snapshots (< number_of_snapshot)
    in_dim = 32
    out_dim = 64
    number_of_snapshot = 8   # padding target along snapshot axis

    module = LinearEmbeddingPallas(in_dim, out_dim, number_of_snapshot, k_param)

    x = jax.random.normal(k_x, (batch, seq, in_dim), dtype=jnp.float32)

    # Path 1: padding=True (pads seq -> number_of_snapshot in-kernel, then linear)
    y_pad = jax.block_until_ready(module(x, padding=True))
    assert y_pad.shape == (batch, number_of_snapshot, out_dim)

    # Path 2: padding=False (plain linear over all rows)
    x_full = jax.random.normal(
        k_x, (batch, number_of_snapshot, in_dim), dtype=jnp.float32)
    y = jax.block_until_ready(module(x_full, padding=False))
    assert y.shape == (batch, number_of_snapshot, out_dim)

    # Reference: bf16-rounded operands, f32 accumulation (matches the kernel).
    w_ref_f32 = module.w_t_bf16.astype(jnp.float32)      # (in_dim, out_dim)
    bias_ref = module.bias2d[0]

    def ref(xin, padding):
        if padding:
            pad = jnp.zeros(
                (xin.shape[0], number_of_snapshot - xin.shape[1], xin.shape[2]),
                xin.dtype)
            xin = jnp.concatenate((xin, pad), axis=1)
        xb = xin.astype(jnp.bfloat16).astype(jnp.float32)
        return xb @ w_ref_f32 + bias_ref

    assert jnp.allclose(y_pad, ref(x, True), atol=2e-3, rtol=2e-3)
    assert jnp.allclose(y, ref(x_full, False), atol=2e-3, rtol=2e-3)

    print("KERNEL_OK")
</pallas_src>

<mosaic_0001>
module attributes {stable_mosaic.version = 11 : i64} {
  func.func @kernel(%arg0: i32, %arg1: memref<1x5x32xf32, #tpu.memory_space<vmem>>, %arg2: memref<32x64xbf16, #tpu.memory_space<vmem>>, %arg3: memref<1x64xf32, #tpu.memory_space<vmem>>, %arg4: memref<1x8x64xf32, #tpu.memory_space<vmem>>) attributes {dimension_semantics = [#tpu.dimension_semantics<parallel>], iteration_bounds = array<i64: 2>, scalar_prefetch = 0 : i64, scratch_operands = 0 : i64, tpu.core_type = #tpu.core_type<tc>, window_params = [{transform_indices = @transform_0, window_bounds = array<i64: 1, 5, 32>}, {pipeline_mode = #tpu.pipeline_mode<synchronous>, transform_indices = @transform_1, window_bounds = array<i64: 32, 64>}, {pipeline_mode = #tpu.pipeline_mode<synchronous>, transform_indices = @transform_2, window_bounds = array<i64: 1, 64>}, {transform_indices = @transform_3, window_bounds = array<i64: 1, 8, 64>}]} {
    %c0 = arith.constant 0 : index
    %c0_0 = arith.constant 0 : index
    %c0_1 = arith.constant 0 : index
    %0 = vector.load %arg1[%c0, %c0_0, %c0_1] : memref<1x5x32xf32, #tpu.memory_space<vmem>>, vector<1x5x32xf32>
    %1 = vector.shape_cast %0 : vector<1x5x32xf32> to vector<5x32xf32>
    %2 = arith.truncf %1 : vector<5x32xf32> to vector<5x32xbf16>
    %c0_2 = arith.constant 0 : index
    %c0_3 = arith.constant 0 : index
    %3 = vector.load %arg2[%c0_2, %c0_3] : memref<32x64xbf16, #tpu.memory_space<vmem>>, vector<32x64xbf16>
    %cst = arith.constant dense<0.000000e+00> : vector<5x64xf32>
    %4 = tpu.matmul %2, %3, %cst {dimension_numbers = #tpu.dot_dimension_numbers<[1], [0], [0], [1], [0, 0, 1, 1], [], []>} : vector<5x32xbf16>, vector<32x64xbf16>, vector<5x64xf32> -> vector<5x64xf32>
    %c0_4 = arith.constant 0 : index
    %c0_5 = arith.constant 0 : index
    %5 = vector.load %arg3[%c0_4, %c0_5] : memref<1x64xf32, #tpu.memory_space<vmem>>, vector<1x64xf32>
    %6 = vector.broadcast %5 : vector<1x64xf32> to vector<5x64xf32>
    %7 = arith.addf %4, %6 : vector<5x64xf32>
    %c0_6 = arith.constant 0 : index
    %c0_7 = arith.constant 0 : index
    %c0_8 = arith.constant 0 : index
    %8 = vector.load %arg4[%c0_6, %c0_7, %c0_8] : memref<1x8x64xf32, #tpu.memory_space<vmem>>, vector<1x5x64xf32>
    %9 = vector.shape_cast %8 : vector<1x5x64xf32> to vector<5x64xf32>
    %10 = vector.shape_cast %7 : vector<5x64xf32> to vector<1x5x64xf32>
    tpu.vector_store %arg4[%c0_6, %c0_7, %c0_8], %10 {strides = array<i32>} : memref<1x8x64xf32, #tpu.memory_space<vmem>>, vector<1x5x64xf32>,
    %c0_9 = arith.constant 0 : index
    %c0_10 = arith.constant 0 : index
    %11 = vector.load %arg3[%c0_9, %c0_10] : memref<1x64xf32, #tpu.memory_space<vmem>>, vector<1x64xf32>
    %12 = vector.shape_cast %11 : vector<1x64xf32> to vector<1x64xf32>
    %13 = vector.broadcast %12 : vector<1x64xf32> to vector<3x64xf32>
    %c0_11 = arith.constant 0 : index
    %c5 = arith.constant 5 : index
    %c0_12 = arith.constant 0 : index
    %14 = vector.load %arg4[%c0_11, %c5, %c0_12] : memref<1x8x64xf32, #tpu.memory_space<vmem>>, vector<1x3x64xf32>
    %15 = vector.shape_cast %14 : vector<1x3x64xf32> to vector<3x64xf32>
    %16 = vector.shape_cast %13 : vector<3x64xf32> to vector<1x3x64xf32>
    tpu.vector_store %arg4[%c0_11, %c5, %c0_12], %16 {strides = array<i32>} : memref<1x8x64xf32, #tpu.memory_space<vmem>>, vector<1x3x64xf32>,
    return
  }
  func.func @transform_0(%arg0: i32) -> (i32, i32, i32) {
    %c0_i32 = arith.constant 0 : i32
    %c0_i32_0 = arith.constant 0 : i32
    %c0_i32_1 = arith.constant 0 : i32
    return %arg0, %c0_i32, %c0_i32_0 : i32, i32, i32
  }
  func.func @transform_1(%arg0: i32) -> (i32, i32) {
    %c0_i32 = arith.constant 0 : i32
    %c0_i32_0 = arith.constant 0 : i32
    %c0_i32_1 = arith.constant 0 : i32
    return %c0_i32, %c0_i32_0 : i32, i32
  }
  func.func @transform_2(%arg0: i32) -> (i32, i32) {
    %c0_i32 = arith.constant 0 : i32
    %c0_i32_0 = arith.constant 0 : i32
    %c0_i32_1 = arith.constant 0 : i32
    return %c0_i32, %c0_i32_0 : i32, i32
  }
  func.func @transform_3(%arg0: i32) -> (i32, i32, i32) {
    %c0_i32 = arith.constant 0 : i32
    %c0_i32_0 = arith.constant 0 : i32
    %c0_i32_1 = arith.constant 0 : i32
    return %arg0, %c0_i32, %c0_i32_0 : i32, i32, i32
  }
}

</mosaic_0001>

<llo_original>
// kernel: tpu_custom_call.1
$region0: #{tpu_custom_call.1}
  #allocation0 [shape = 'u32[]', space=smem, size = 0x4, offset = 0x4, fixed_abs, tag = 'smem constant byte address 0x4 - core index']
  #allocation1 [shape = 'u32[72,128]{1,0:T(1,128)}', space=vmem, size = 0x9000, scoped, tag = 'internal scratch']
  %s0 = inlined_call_operand.vmem [shape: f32[2,5,32], index: 0, kind: input, shape index: {}]
  %s1 = inlined_call_operand.vmem [shape: bf16[32,64], index: 1, kind: input, shape index: {}]
  %s2 = inlined_call_operand.vmem [shape: f32[1,64], index: 2, kind: input, shape index: {}]
  %s3 = inlined_call_operand.hbm [shape: f32[2,8,64], index: 3, kind: output, shape index: {}]
  %s4 = sld [smem:[#allocation0]]
  $region45: #{tpu_custom_call.1} parent=0
    _
  %s6 = ssub.s32 1, %s4
  %s7 = scalar_select 0, %s6, %s4
  $region1: #{tpu_custom_call.1} parent=0
    #allocation2 [shape = 'u8[8192]{0}', space=vmem, size = 0x2000, scoped, tag = 'output window, operand 0']
    #allocation3 [shape = 's32[2]{0}', space=sflag, size = 0x8, scoped, tag = 'scoped memory for tpu_custom_call.1']
    %8 = vsyncpa [#allocation3], 0
    %s9 = scalar_lea.sflag [#allocation3], 1
    %10 = vsyncpa %s9, 0
    loop: start=0, step=1, limit=4
    $region2: #{tpu_custom_call.1} parent=1 // loop_pre_header
      _
    $region3: #{tpu_custom_call.1} parent=1 // loop_header
      %s12 = sphi 0, %s16
      %p13 = scmp.ge.s32.totalorder %s12, 4
      %s22 = sphi 0, %s24
      %s25 = sphi 0, %s22
      %s26 = sphi 0, %s25
      %s42 = sphi 0, %s26
      %s46 = sphi 0, %s46
      %s48 = sphi 0, %s46
      %s49 = sphi 0, %s48
      %s63 = sphi 0, %s49
      %s67 = sphi 0, %s67
      %s69 = sphi 0, %s67
      %s70 = sphi 0, %s69
      %s84 = sphi 0, %s70
      %s90 = sphi 0, %s92
      %s93 = sphi 0, %s90
      %s94 = sphi 0, %s93
      %s110 = sphi 0, %s94
    $region4: #{tpu_custom_call.1} parent=1 // loop_header_branch
      %15 = sbr.rel (%p13) target = $region8
    $region5: #{tpu_custom_call.1} parent=1 // loop_body
      %s17 = ssub.s32 %s12, 1
      %s18 = ssub.s32 %s12, 2
      %s19 = sadd.s32 %s12, 1
      %s20 = ssub.s32 %s12, %s19
      %p21 = scmp.eq.s32.totalorder %s20, 0
      %s23 = sadd.s32 %s22, 1
      %s24 = scalar_select %p21, %s22, %s23
      %p27 = pneg %p21
      %p28 = scmp.eq.s32.totalorder %s12, 1
      %p29 = por %p27, %p28
      %p30 = scmp.ne.s32.totalorder %s22, %s25
      %p31 = scmp.eq.s32.totalorder %s12, 0
      %p32 = por %p30, %p31
      %p33 = scmp.ne.s32.totalorder %s22, %s25
      %p34 = scmp.eq.s32.totalorder %s17, 1
      %p35 = por %p33, %p34
      %p36 = scmp.ne.s32.totalorder %s25, %s26
      %p37 = scmp.eq.s32.totalorder %s17, 0
      %p38 = por %p36, %p37
      %p39 = scmp.ne.s32.totalorder %s25, %s26
      %p40 = scmp.eq.s32.totalorder %s18, 1
      %p41 = por %p39, %p40
      %p43 = scmp.ne.s32.totalorder %s26, %s42
      %p44 = scmp.eq.s32.totalorder %s18, 0
      %p45 = por %p43, %p44
      %s47 = sadd.s32 %s46, 1
      %p50 = scmp.eq.s32.totalorder %s12, 1
      %p51 = scmp.ne.s32.totalorder %s46, %s48
      %p52 = scmp.eq.s32.totalorder %s12, 0
      %p53 = por %p51, %p52
      %p54 = scmp.ne.s32.totalorder %s46, %s48
      %p55 = scmp.eq.s32.totalorder %s17, 1
      %p56 = por %p54, %p55
      %p57 = scmp.ne.s32.totalorder %s48, %s49
      %p58 = scmp.eq.s32.totalorder %s17, 0
      %p59 = por %p57, %p58
      %p60 = scmp.ne.s32.totalorder %s48, %s49
      %p61 = scmp.eq.s32.totalorder %s18, 1
      %p62 = por %p60, %p61
      %p64 = scmp.ne.s32.totalorder %s49, %s63
      %p65 = scmp.eq.s32.totalorder %s18, 0
      %p66 = por %p64, %p65
      %s68 = sadd.s32 %s67, 1
      %p71 = scmp.eq.s32.totalorder %s12, 1
      %p72 = scmp.ne.s32.totalorder %s67, %s69
      %p73 = scmp.eq.s32.totalorder %s12, 0
      %p74 = por %p72, %p73
      %p75 = scmp.ne.s32.totalorder %s67, %s69
      %p76 = scmp.eq.s32.totalorder %s17, 1
      %p77 = por %p75, %p76
      %p78 = scmp.ne.s32.totalorder %s69, %s70
      %p79 = scmp.eq.s32.totalorder %s17, 0
      %p80 = por %p78, %p79
      %p81 = scmp.ne.s32.totalorder %s69, %s70
      %p82 = scmp.eq.s32.totalorder %s18, 1
      %p83 = por %p81, %p82
      %p85 = scmp.ne.s32.totalorder %s70, %s84
      %p86 = scmp.eq.s32.totalorder %s18, 0
      %p87 = por %p85, %p86
      %s88 = ssub.s32 %s12, %s19
      %p89 = scmp.eq.s32.totalorder %s88, 0
      %s91 = sadd.s32 %s90, 1
      %s92 = scalar_select %p89, %s90, %s91
      %p95 = pneg %p89
      %p96 = scmp.eq.s32.totalorder %s12, 1
      %p97 = por %p95, %p96
      %p98 = scmp.ne.s32.totalorder %s90, %s93
      %p99 = scmp.eq.s32.totalorder %s12, 0
      %p100 = por %p98, %p99
      %p101 = scmp.ne.s32.totalorder %s90, %s93
      %p102 = scmp.eq.s32.totalorder %s17, 1
      %p103 = por %p101, %p102
      %p104 = scmp.ne.s32.totalorder %s93, %s94
      %p105 = scmp.eq.s32.totalorder %s17, 0
      %p106 = por %p104, %p105
      %p107 = scmp.ne.s32.totalorder %s93, %s94
      %p108 = scmp.eq.s32.totalorder %s18, 1
      %p109 = por %p107, %p108
      %p111 = scmp.ne.s32.totalorder %s94, %s110
      %p112 = scmp.eq.s32.totalorder %s18, 0
      %p113 = por %p111, %p112
      %p114 = scmp.le.s32.totalorder 1, %s12
      %p115 = scmp.lt.s32.totalorder %s12, 3
      %p116 = pnand %p114, %p115
      %p117 = pneg %p116
      // Predicated region
      $region9: #{tpu_custom_call.1} parent=5 // pred_check
        _
      $region10: #{tpu_custom_call.1} parent=5 // pred_check_branch
        %119 = sbr.rel (%p116) target = $region12
      $region11: #{tpu_custom_call.1} parent=5 // pred_region
        %s120 = ssub.s32 %s12, 1
        // Predicated region
        $region13: #{tpu_custom_call.1} parent=11 // pred_check
          %p121 = pneg %p59
        $region14: #{tpu_custom_call.1} parent=11 // pred_check_branch
          %123 = sbr.rel (%p121) target = $region16
        $region15: #{tpu_custom_call.1} parent=11 // pred_region
          _
        $region16: #{tpu_custom_call.1} parent=11 // pred_fallthru
          _
        // Predicated region
        $region17: #{tpu_custom_call.1} parent=11 // pred_check
          %p124 = pneg %p80
        $region18: #{tpu_custom_call.1} parent=11 // pred_check_branch
          %126 = sbr.rel (%p124) target = $region20
        $region19: #{tpu_custom_call.1} parent=11 // pred_region
          _
        $region20: #{tpu_custom_call.1} parent=11 // pred_fallthru
          _
      $region12: #{tpu_custom_call.1} parent=5 // pred_fallthru
        _
      %p127 = scmp.lt.s32.totalorder %s12, 2
      // Predicated region
      $region21: #{tpu_custom_call.1} parent=5 // pred_check
        %p128 = pneg %p127
      $region22: #{tpu_custom_call.1} parent=5 // pred_check_branch
        %130 = sbr.rel (%p128) target = $region24
      $region23: #{tpu_custom_call.1} parent=5 // pred_region
        // Predicated region
        $region25: #{tpu_custom_call.1} parent=23 // pred_check
          %p131 = pneg %p32
        $region26: #{tpu_custom_call.1} parent=23 // pred_check_branch
          %133 = sbr.rel (%p131) target = $region28
        $region27: #{tpu_custom_call.1} parent=23 // pred_region
          %p134 = scmp.lt.s32.totalorder %s12, 1
          %s135 = scalar_select %p134, %s12, 1
          %s136 = smul.addr %s135, 8
          %s137 = scalar_lea.vmem %s0, %s136
        $region28: #{tpu_custom_call.1} parent=23 // pred_fallthru
          _
      $region24: #{tpu_custom_call.1} parent=5 // pred_fallthru
        _
      %p138 = scmp.le.s32.totalorder 1, %s12
      %p139 = scmp.lt.s32.totalorder %s12, 3
      %p140 = pnand %p138, %p139
      %p141 = pneg %p140
      // Predicated region
      $region29: #{tpu_custom_call.1} parent=5 // pred_check
        _
      $region30: #{tpu_custom_call.1} parent=5 // pred_check_branch
        %143 = sbr.rel (%p140) target = $region32
      $region31: #{tpu_custom_call.1} parent=5 // pred_region
        %s144 = ssub.s32 %s12, 1
        %p145 = scmp.lt.s32.totalorder %s17, 1
        %s146 = scalar_select %p145, %s17, 1
        %s147 = smul.addr %s146, 8
        %s148 = scalar_lea.vmem %s0, %s147
        %p149 = pneg %p38
        %p150 = pneg %p35
        %p151 = pneg %p59
        %p152 = pneg %p56
        %p153 = pneg %p80
        %p154 = pneg %p77
        %p155 = pneg %p106
        %p156 = pneg %p103
        %s157 = sand.u32 %s93, 1
        %s158 = scalar_lea.sflag [#allocation3], %s157
        %s159 = sand.u32 %s93, 1
        %s160 = smul.addr %s159, 8
        %s161 = scalar_lea.vmem [#allocation2], %s160
        %p162 = scmp.lt.s32.totalorder %s17, 1
        %s163 = scalar_select %p162, %s17, 1
        %s164 = smul.addr %s163, 8
        %s165 = scalar_lea.vmem %s0, %s164
        %v167 = vld [vmem:[%s165] sm:$0x1f]
        %v168 = vpack.c.bf16 %v167, %v167
        %v169 = vld [vmem:[%s1] sm:$0xf]
        %v170 = vld [vmem:[%s1 + $0x4] sm:$0xf]
        %v171 = vld [vmem:[%s1 + $0x8] sm:$0xf]
        %v172 = vld [vmem:[%s1 + $0xc] sm:$0xf]
        %v173 = vld [vmem:[%s2] sm:$0x1]
        %v175 = vperm.slane %v173, 0
        %v181 = vunpack.c.l.b16 %v169
        %v182 = vunpack.c.l.b16 %v170
        %v183 = vunpack.c.l.b16 %v171
        %v184 = vunpack.c.l.b16 %v172
        %v185 = vpack.c.b16 %v182, %v181
        %v186 = vpack.c.b16 %v184, %v183
        %vm189 = vcmask 261120
        %v191 = vsel %vm189, %v168, 0
        %193 = vmatpush.bf16.msra.mxu0 0
        %194 = vmatpush.bf16.msra.mxu0 0
        %195 = vmatpush.bf16.msra.mxu0 0
        %196 = vmatpush.bf16.msra.mxu0 0
        %197 = vmatpush.bf16.msra.mxu0 0
        %198 = vmatpush.bf16.msra.mxu0 0
        %199 = vmatpush.bf16.msra.mxu0 %v186
        %200 = vmatpush.bf16.msra.mxu0 %v185
        %201 = vmatmul.bf16.gmra.mxu0 %v191
        %v202 = vpop.f32.mrf.mxu0
        %v203 = vadd.f32 %v175, %v202
        %v204 = vpop.f32.mrf.mxu0
        %205 = vdwg.mxu0
        %vm206 = vcmask 520192
        %207 = vst.msk [vmem:[%s161] sm:$0x1f] %vm206, %v203
        %v208 = vld [vmem:[%s2] sm:$0x1]
        %v210 = vperm.slane %v208, 0
        %vm212 = vcmask 518144
        %213 = vst.msk [vmem:[%s161 + $0x5] sm:$0x7] %vm212, %v210
        %s214 = sand.u32 %s93, 1
        %s215 = scalar_lea.sflag [#allocation3], %s214
        %s216 = sand.u32 %s93, 1
        %s217 = smul.addr %s216, 8
        %s218 = scalar_lea.vmem [#allocation2], %s217
        // Predicated region
        $region33: #{tpu_custom_call.1} parent=31 // pred_check
          %p219 = pneg %p103
        $region34: #{tpu_custom_call.1} parent=31 // pred_check_branch
          %221 = sbr.rel (%p219) target = $region36
        $region35: #{tpu_custom_call.1} parent=31 // pred_region
          %223 = vsyncadd %s215, 0
          %s224 = smul.addr %s17, 8
          %s225 = scalar_lea.hbm %s3, %s224
          %s227 = sshll.u32 %s218, 4
          %s228 = int_to_ptr.vmem [resolvable:$true] %s227
          %s229 = sshll.u32 %s225, 4
          %s230 = int_to_ptr.hbm [resolvable:$true] %s229
          %232 = dma.vmem_to_hbm [thread:$0]  %s228, 128, %s230, %s215
        $region36: #{tpu_custom_call.1} parent=31 // pred_fallthru
          _
      $region32: #{tpu_custom_call.1} parent=5 // pred_fallthru
        _
      %p233 = scmp.le.s32.totalorder 2, %s12
      // Predicated region
      $region37: #{tpu_custom_call.1} parent=5 // pred_check
        %p234 = pneg %p233
      $region38: #{tpu_custom_call.1} parent=5 // pred_check_branch
        %236 = sbr.rel (%p234) target = $region40
      $region39: #{tpu_custom_call.1} parent=5 // pred_region
        %s237 = ssub.s32 %s12, 2
        // Predicated region
        $region41: #{tpu_custom_call.1} parent=39 // pred_check
          %p238 = pneg %p109
        $region42: #{tpu_custom_call.1} parent=39 // pred_check_branch
          %240 = sbr.rel (%p238) target = $region44
        $region43: #{tpu_custom_call.1} parent=39 // pred_region
          %s241 = sand.u32 %s94, 1
          %s242 = scalar_lea.sflag [#allocation3], %s241
          %s243 = sand.u32 %s94, 1
          %s244 = smul.addr %s243, 8
          %s245 = scalar_lea.vmem [#allocation2], %s244
          %247 = dma.done %s242, 128
        $region44: #{tpu_custom_call.1} parent=39 // pred_fallthru
          _
      $region40: #{tpu_custom_call.1} parent=5 // pred_fallthru
        _
    $region6: #{tpu_custom_call.1} parent=1 // loop_footer
      %s16 = sadd.s32 1, %s12
    $region7: #{tpu_custom_call.1} parent=1 // loop_footer_branch
      %11 = sbr.rel target = $region3
    $region8: #{tpu_custom_call.1} parent=1 // loop_exit
      _
    %248 = vsyncpa [#allocation3], 1
    %s249 = scalar_lea.sflag [#allocation3], 1
    %250 = vsyncpa %s249, 1

</llo_original>
